<compile_context>
chip_gen: v5e
topology: v5e:2x2
jax: 0.10.0
libtpu: 0.0.40
codegen_flags: <defaults>
</compile_context>

<pallas_src>
import functools
import jax
import jax.numpy as jnp
from jax.experimental import pallas as pl
from jax.experimental.pallas import tpu as pltpu

# ---------------- synthetic env constants (deterministic, small) ------------
STATE_DIM   = 6      # env.state_dim
PLAN_WIDTH  = 10     # env.plan_width
OUT_SIZE    = 3      # action space of the 1d1r printing env
HIDDEN_SIZE = 32
BSIZE       = 2
TIME_STEP   = 8

IN_DIM = STATE_DIM + PLAN_WIDTH            # 16

# Row offsets inside the single packed parameter slab (all multiples of 8 ->
# aligned sublane slices, i.e. free views inside the kernel).
R_W1S   = 0                                 # w1 rows for state features (6, pad 8)
R_W1P   = 8                                 # w1 rows for plan features (10, pad 16)
R_W2    = 24                                # (128,128), rows 64:128 zero
R_W3    = R_W2 + 128                        # 152
R_WIH   = R_W3 + 128                        # 280
R_WHH   = R_WIH + 128                       # 408
R_WHEAD = R_WHH + HIDDEN_SIZE               # 440, folded dueling head in cols 64:67
R_BIAS  = R_WHEAD + HIDDEN_SIZE             # 472: b1 | b2 | b3 | bih+bhh | head | 0..
W_ROWS  = R_BIAS + 8                        # 480


def qnet_kernel(T, x_ref, plan_ref, w_ref, state_ref, out_ref):
    """3-layer MLP -> LSTM over T steps -> (pre-folded) dueling head.

    x_ref    : (B*T, STATE_DIM)   batch-major rows (row = b*T + t), as torch .view
    plan_ref : (B*T, PLAN_WIDTH)
    w_ref    : (480, 128)         packed weight+bias slab
    state_ref: (B, 128)           lanes [0:H]=h0, [H:2H]=c0  (aliased with out)
    out_ref  : (B, 128)           lanes [0:H]=h_n, [H:2H]=c_n, [2H:2H+OUT]=q
    """
    H = HIDDEN_SIZE
    B = out_ref.shape[0]

    # ---- static, sublane-aligned views into the packed parameter slab ------
    w1s    = w_ref[R_W1S:R_W1S + STATE_DIM, :]     # (6,   128) out cols 64:128 = 0
    w1p    = w_ref[R_W1P:R_W1P + PLAN_WIDTH, :]    # (10,  128) out cols 64:128 = 0
    w2     = w_ref[R_W2:R_W3, :]                   # (128, 128) rows 64:128 = 0
    w3     = w_ref[R_W3:R_WIH, :]                  # (128, 128)
    wih    = w_ref[R_WIH:R_WHH, :]                 # (128, 4H)
    whh    = w_ref[R_WHH:R_WHEAD, :]               # (H,   4H)
    w_head = w_ref[R_WHEAD:R_BIAS, :]              # (H,   128) folded head in cols 2H:2H+OUT
    b1     = w_ref[R_BIAS + 0:R_BIAS + 1, :]
    b2     = w_ref[R_BIAS + 1:R_BIAS + 2, :]
    b3     = w_ref[R_BIAS + 2:R_BIAS + 3, :]
    b_lstm = w_ref[R_BIAS + 3:R_BIAS + 4, :]       # bih + bhh, pre-summed in pack_params
    b_head = w_ref[R_BIAS + 4:R_BIAS + 5, :]       # folded head bias in lanes 2H:2H+OUT

    # ---- MLP over all (B*T) rows (in-kernel "concat" via split layer-1) ----
    x = x_ref[...]                                 # (B*T, 6)
    p = plan_ref[...]                              # (B*T, 10)
    h = (jnp.dot(x, w1s, preferred_element_type=jnp.float32)
         + jnp.dot(p, w1p, preferred_element_type=jnp.float32))
    h = jnp.maximum(h + b1, 0.0)                   # lanes 64:128 stay exactly 0
    h = jnp.maximum(jnp.dot(h, w2, preferred_element_type=jnp.float32) + b2, 0.0)
    feats = jnp.maximum(jnp.dot(h, w3, preferred_element_type=jnp.float32) + b3, 0.0)

    # ---- LSTM (num_layers=1), PyTorch gate order i,f,g,o -------------------
    # Input projection hoisted out of the recurrence: one M=B*T matmul.
    ig = jnp.dot(feats, wih, preferred_element_type=jnp.float32) + b_lstm   # (B*T, 4H)
    ig3 = ig.reshape(B, T, 4 * H)                  # free leading-dim split (tile-aligned: T=8)

    h_t = state_ref[:, 0:H]                        # (B, H)
    c_t = state_ref[:, H:2 * H]                    # (B, H)
    for t in range(T):                             # static unroll, T is small
        # ig3[:, t, :] is a *static* 2-sublane select (one sublane from each
        # batch vreg); the serial work per step is the (B,H)x(H,4H) matmul.
        gates = ig3[:, t, :] + jnp.dot(h_t, whh, preferred_element_type=jnp.float32)
        sig = jax.nn.sigmoid(gates)                # 2 EUP pushes per step
        tnh = jnp.tanh(gates)
        i_g = sig[:, 0 * H:1 * H]
        f_g = sig[:, 1 * H:2 * H]
        g_g = tnh[:, 2 * H:3 * H]
        o_g = sig[:, 3 * H:4 * H]
        c_t = f_g * c_t + i_g * g_g
        h_t = o_g * jnp.tanh(c_t)

    # ---- pre-folded dueling head: single matmul + bias ---------------------
    head = jnp.dot(h_t, w_head, preferred_element_type=jnp.float32) + b_head  # (B,128)
    # Lane-dense output slab written with one full-width store:
    #   [ h_n (0:H) | c_n (H:2H) | q (2H:2H+OUT) | zeros ]
    out_ref[...] = jnp.concatenate([h_t, c_t, head[:, 2 * H:]], axis=1)


def pack_params(params):
    """Pack all 15 parameter tensors into ONE lane-dense f32 slab (done once)."""
    f32 = jnp.float32
    H = HIDDEN_SIZE
    slab = jnp.zeros((W_ROWS, 128), f32)

    # Layer 1 split: state-feature rows and plan-feature rows (out dim 64 -> lanes 0:64).
    slab = slab.at[R_W1S:R_W1S + STATE_DIM, :64].set(params["w1"][:STATE_DIM])
    slab = slab.at[R_W1P:R_W1P + PLAN_WIDTH, :64].set(params["w1"][STATE_DIM:])
    slab = slab.at[R_W2:R_W2 + 64, :].set(params["w2"])
    slab = slab.at[R_W3:R_W3 + 128, :].set(params["w3"])
    slab = slab.at[R_WIH:R_WIH + 128, :].set(params["wih"])
    slab = slab.at[R_WHH:R_WHH + H, :].set(params["whh"])

    # Fold the whole dueling head into one (H, OUT) matrix + (OUT,) bias:
    #   q = h @ (Wadv - colmean(Wadv) + Wval) + (badv - mean(badv) + bval)
    w_fold = (params["wadv"]
              - jnp.mean(params["wadv"], axis=1, keepdims=True)
              + params["wval"])                                   # (H, OUT)
    b_fold = params["badv"] - jnp.mean(params["badv"]) + params["bval"]   # (1, OUT)
    slab = slab.at[R_WHEAD:R_WHEAD + H, 2 * H:2 * H + OUT_SIZE].set(w_fold)

    # Bias rows (merged into the same slab).
    slab = slab.at[R_BIAS + 0, :64].set(params["b1"][0])
    slab = slab.at[R_BIAS + 1, :].set(params["b2"][0])
    slab = slab.at[R_BIAS + 2, :].set(params["b3"][0])
    slab = slab.at[R_BIAS + 3, :].set((params["bih"] + params["bhh"])[0])
    slab = slab.at[R_BIAS + 4, 2 * H:2 * H + OUT_SIZE].set(b_fold[0])
    return slab


@functools.partial(jax.jit, static_argnums=(3, 4))
def qnet_forward(w_slab, x, plan, bsize, time_step, hidden_state, cell_state):
    """Module-equivalent forward.  Wrapper does only free .view-style reshapes
    plus packing (h0|c0) into the lane-dense state slab; hot path is one kernel.
    For rollouts, carry the (B,128) output slab straight into the next call's
    state slab (it is the aliased input) to skip even this packing."""
    H = HIDDEN_SIZE
    x2 = x.reshape(bsize * time_step, STATE_DIM).astype(jnp.float32)      # == torch .view
    plan2 = plan.reshape(bsize * time_step, PLAN_WIDTH).astype(jnp.float32)

    state0 = jnp.zeros((bsize, 128), jnp.float32)
    state0 = state0.at[:, 0:H].set(hidden_state)
    state0 = state0.at[:, H:2 * H].set(cell_state)

    vmem = pl.BlockSpec(memory_space=pltpu.MemorySpace.VMEM)
    out = pl.pallas_call(
        functools.partial(qnet_kernel, time_step),
        out_shape=jax.ShapeDtypeStruct((bsize, 128), jnp.float32),
        in_specs=[vmem, vmem, vmem, vmem],
        out_specs=vmem,
        input_output_aliases={3: 0},     # state slab aliases the output slab
    )(x2, plan2, w_slab, state0)

    h_n = out[:, 0:H]
    c_n = out[:, H:2 * H]
    qout = out[:, 2 * H:2 * H + OUT_SIZE]
    return qout, (h_n, c_n)


def init_params(key):
    """Deterministic init mirroring get_and_init_FC_layer (weight ~ N(0, 0.1))."""
    ks = jax.random.split(key, 16)
    H = HIDDEN_SIZE

    def lin(k, din, dout):
        kw, kb = jax.random.split(k)
        w = 0.1 * jax.random.normal(kw, (din, dout), jnp.float32)   # [in, out]
        b = 0.01 * jax.random.normal(kb, (1, dout), jnp.float32)
        return w, b

    w1, b1 = lin(ks[0], IN_DIM, 64)
    w2, b2 = lin(ks[1], 64, 128)
    w3, b3 = lin(ks[2], 128, 128)
    wadv, badv = lin(ks[3], H, OUT_SIZE)
    wval, bval = lin(ks[4], H, 1)
    # LSTM params (PyTorch layout transposed to [in, 4H]), gate order i,f,g,o
    wih = 0.1 * jax.random.normal(ks[5], (128, 4 * H), jnp.float32)
    whh = 0.1 * jax.random.normal(ks[6], (H, 4 * H), jnp.float32)
    bih = 0.01 * jax.random.normal(ks[7], (1, 4 * H), jnp.float32)
    bhh = 0.01 * jax.random.normal(ks[8], (1, 4 * H), jnp.float32)
    return dict(w1=w1, b1=b1, w2=w2, b2=b2, w3=w3, b3=b3,
                wih=wih, whh=whh, bih=bih, bhh=bhh,
                wadv=wadv, badv=badv, wval=wval, bval=bval)


def qnet_reference(params, x, plan, bsize, time_step, h0, c0):
    """Pure-JAX reference (batch-major, unpacked params, unfused head)."""
    plan2 = plan.reshape(bsize * time_step, PLAN_WIDTH)
    x2 = x.reshape(bsize * time_step, STATE_DIM)
    xc = jnp.concatenate((x2, plan2), axis=1)
    h = jnp.maximum(xc @ params["w1"] + params["b1"], 0.0)
    h = jnp.maximum(h @ params["w2"] + params["b2"], 0.0)
    feats = jnp.maximum(h @ params["w3"] + params["b3"], 0.0).reshape(
        bsize, time_step, 128)
    H = HIDDEN_SIZE
    h_t, c_t = h0, c0
    bias = params["bih"] + params["bhh"]
    for t in range(time_step):
        g = feats[:, t, :] @ params["wih"] + h_t @ params["whh"] + bias
        i = jax.nn.sigmoid(g[:, 0 * H:1 * H])
        f = jax.nn.sigmoid(g[:, 1 * H:2 * H])
        gg = jnp.tanh(g[:, 2 * H:3 * H])
        o = jax.nn.sigmoid(g[:, 3 * H:4 * H])
        c_t = f * c_t + i * gg
        h_t = o * jnp.tanh(c_t)
    adv = h_t @ params["wadv"] + params["badv"]
    val = h_t @ params["wval"] + params["bval"]
    q = val + (adv - adv.mean(axis=1, keepdims=True))
    return q, (h_t, c_t)


if __name__ == "__main__":
    key = jax.random.PRNGKey(0)
    kp, kx, kplan = jax.random.split(key, 3)
    params = init_params(kp)
    w_slab = pack_params(params)          # done once, reused every call

    x = jax.random.normal(kx, (BSIZE, TIME_STEP, STATE_DIM), jnp.float32)
    plan = jax.random.normal(kplan, (BSIZE, TIME_STEP, PLAN_WIDTH), jnp.float32)
    # init_hidden_states(bsize): zeros; PyTorch shape (1, bsize, H) -> (bsize, H)
    h0 = jnp.zeros((BSIZE, HIDDEN_SIZE), jnp.float32)
    c0 = jnp.zeros((BSIZE, HIDDEN_SIZE), jnp.float32)

    qout, (h_n, c_n) = qnet_forward(w_slab, x, plan, BSIZE, TIME_STEP, h0, c0)
    jax.block_until_ready((qout, h_n, c_n))

    q_ref, (h_ref, c_ref) = qnet_reference(params, x, plan, BSIZE, TIME_STEP, h0, c0)
    assert jnp.allclose(qout, q_ref, atol=2e-4, rtol=2e-4)
    assert jnp.allclose(h_n, h_ref, atol=2e-4, rtol=2e-4)
    assert jnp.allclose(c_n, c_ref, atol=2e-4, rtol=2e-4)

    print("KERNEL_OK")
</pallas_src>

<mosaic_0001>
module attributes {stable_mosaic.version = 11 : i64} {
  func.func @qnet_kernel(%arg0: memref<16x6xf32, #tpu.memory_space<vmem>>, %arg1: memref<16x10xf32, #tpu.memory_space<vmem>>, %arg2: memref<480x128xf32, #tpu.memory_space<vmem>>, %arg3: memref<2x128xf32, #tpu.memory_space<vmem>>, %arg4: memref<2x128xf32, #tpu.memory_space<vmem>>) attributes {dimension_semantics = [], scalar_prefetch = 0 : i64, scratch_operands = 0 : i64, tpu.core_type = #tpu.core_type<tc>} {
    %c0 = arith.constant 0 : index
    %c0_0 = arith.constant 0 : index
    %0 = vector.load %arg2[%c0, %c0_0] : memref<480x128xf32, #tpu.memory_space<vmem>>, vector<6x128xf32>
    %c8 = arith.constant 8 : index
    %c0_1 = arith.constant 0 : index
    %1 = vector.load %arg2[%c8, %c0_1] : memref<480x128xf32, #tpu.memory_space<vmem>>, vector<10x128xf32>
    %c24 = arith.constant 24 : index
    %c0_2 = arith.constant 0 : index
    %2 = vector.load %arg2[%c24, %c0_2] : memref<480x128xf32, #tpu.memory_space<vmem>>, vector<128x128xf32>
    %c152 = arith.constant 152 : index
    %c0_3 = arith.constant 0 : index
    %3 = vector.load %arg2[%c152, %c0_3] : memref<480x128xf32, #tpu.memory_space<vmem>>, vector<128x128xf32>
    %c280 = arith.constant 280 : index
    %c0_4 = arith.constant 0 : index
    %4 = vector.load %arg2[%c280, %c0_4] : memref<480x128xf32, #tpu.memory_space<vmem>>, vector<128x128xf32>
    %c408 = arith.constant 408 : index
    %c0_5 = arith.constant 0 : index
    %5 = vector.load %arg2[%c408, %c0_5] : memref<480x128xf32, #tpu.memory_space<vmem>>, vector<32x128xf32>
    %c440 = arith.constant 440 : index
    %c0_6 = arith.constant 0 : index
    %6 = vector.load %arg2[%c440, %c0_6] : memref<480x128xf32, #tpu.memory_space<vmem>>, vector<32x128xf32>
    %c472 = arith.constant 472 : index
    %c0_7 = arith.constant 0 : index
    %7 = vector.load %arg2[%c472, %c0_7] : memref<480x128xf32, #tpu.memory_space<vmem>>, vector<1x128xf32>
    %c473 = arith.constant 473 : index
    %c0_8 = arith.constant 0 : index
    %8 = vector.load %arg2[%c473, %c0_8] : memref<480x128xf32, #tpu.memory_space<vmem>>, vector<1x128xf32>
    %c474 = arith.constant 474 : index
    %c0_9 = arith.constant 0 : index
    %9 = vector.load %arg2[%c474, %c0_9] : memref<480x128xf32, #tpu.memory_space<vmem>>, vector<1x128xf32>
    %c475 = arith.constant 475 : index
    %c0_10 = arith.constant 0 : index
    %10 = vector.load %arg2[%c475, %c0_10] : memref<480x128xf32, #tpu.memory_space<vmem>>, vector<1x128xf32>
    %c476 = arith.constant 476 : index
    %c0_11 = arith.constant 0 : index
    %11 = vector.load %arg2[%c476, %c0_11] : memref<480x128xf32, #tpu.memory_space<vmem>>, vector<1x128xf32>
    %c0_12 = arith.constant 0 : index
    %c0_13 = arith.constant 0 : index
    %12 = vector.load %arg0[%c0_12, %c0_13] : memref<16x6xf32, #tpu.memory_space<vmem>>, vector<16x6xf32>
    %c0_14 = arith.constant 0 : index
    %c0_15 = arith.constant 0 : index
    %13 = vector.load %arg1[%c0_14, %c0_15] : memref<16x10xf32, #tpu.memory_space<vmem>>, vector<16x10xf32>
    %cst = arith.constant dense<0.000000e+00> : vector<16x128xf32>
    %14 = tpu.matmul %12, %0, %cst {dimension_numbers = #tpu.dot_dimension_numbers<[1], [0], [0], [1], [0, 0, 1, 1], [], []>} : vector<16x6xf32>, vector<6x128xf32>, vector<16x128xf32> -> vector<16x128xf32>
    %cst_16 = arith.constant dense<0.000000e+00> : vector<16x128xf32>
    %15 = tpu.matmul %13, %1, %cst_16 {dimension_numbers = #tpu.dot_dimension_numbers<[1], [0], [0], [1], [0, 0, 1, 1], [], []>} : vector<16x10xf32>, vector<10x128xf32>, vector<16x128xf32> -> vector<16x128xf32>
    %16 = arith.addf %14, %15 : vector<16x128xf32>
    %17 = vector.broadcast %7 : vector<1x128xf32> to vector<16x128xf32>
    %18 = arith.addf %16, %17 : vector<16x128xf32>
    %cst_17 = arith.constant 0.000000e+00 : f32
    %19 = vector.broadcast %cst_17 : f32 to vector<16x128xf32>
    %20 = arith.maximumf %18, %19 : vector<16x128xf32>
    %cst_18 = arith.constant dense<0.000000e+00> : vector<16x128xf32>
    %21 = tpu.matmul %20, %2, %cst_18 {dimension_numbers = #tpu.dot_dimension_numbers<[1], [0], [0], [1], [0, 0, 1, 1], [], []>} : vector<16x128xf32>, vector<128x128xf32>, vector<16x128xf32> -> vector<16x128xf32>
    %22 = vector.broadcast %8 : vector<1x128xf32> to vector<16x128xf32>
    %23 = arith.addf %21, %22 : vector<16x128xf32>
    %cst_19 = arith.constant 0.000000e+00 : f32
    %24 = vector.broadcast %cst_19 : f32 to vector<16x128xf32>
    %25 = arith.maximumf %23, %24 : vector<16x128xf32>
    %cst_20 = arith.constant dense<0.000000e+00> : vector<16x128xf32>
    %26 = tpu.matmul %25, %3, %cst_20 {dimension_numbers = #tpu.dot_dimension_numbers<[1], [0], [0], [1], [0, 0, 1, 1], [], []>} : vector<16x128xf32>, vector<128x128xf32>, vector<16x128xf32> -> vector<16x128xf32>
    %27 = vector.broadcast %9 : vector<1x128xf32> to vector<16x128xf32>
    %28 = arith.addf %26, %27 : vector<16x128xf32>
    %cst_21 = arith.constant 0.000000e+00 : f32
    %29 = vector.broadcast %cst_21 : f32 to vector<16x128xf32>
    %30 = arith.maximumf %28, %29 : vector<16x128xf32>
    %cst_22 = arith.constant dense<0.000000e+00> : vector<16x128xf32>
    %31 = tpu.matmul %30, %4, %cst_22 {dimension_numbers = #tpu.dot_dimension_numbers<[1], [0], [0], [1], [0, 0, 1, 1], [], []>} : vector<16x128xf32>, vector<128x128xf32>, vector<16x128xf32> -> vector<16x128xf32>
    %32 = vector.broadcast %10 : vector<1x128xf32> to vector<16x128xf32>
    %33 = arith.addf %31, %32 : vector<16x128xf32>
    %34 = vector.shape_cast %33 : vector<16x128xf32> to vector<2x8x128xf32>
    %c0_23 = arith.constant 0 : index
    %c0_24 = arith.constant 0 : index
    %35 = vector.load %arg3[%c0_23, %c0_24] : memref<2x128xf32, #tpu.memory_space<vmem>>, vector<2x32xf32>
    %c0_25 = arith.constant 0 : index
    %c32 = arith.constant 32 : index
    %36 = vector.load %arg3[%c0_25, %c32] : memref<2x128xf32, #tpu.memory_space<vmem>>, vector<2x32xf32>
    %37 = vector.extract_strided_slice %34 {offsets = [0, 0, 0], sizes = [2, 1, 128], strides = [1, 1, 1]} : vector<2x8x128xf32> to vector<2x1x128xf32>
    %38 = vector.shape_cast %37 : vector<2x1x128xf32> to vector<2x128xf32>
    %cst_26 = arith.constant dense<0.000000e+00> : vector<2x128xf32>
    %39 = tpu.matmul %35, %5, %cst_26 {dimension_numbers = #tpu.dot_dimension_numbers<[1], [0], [0], [1], [0, 0, 1, 1], [], []>} : vector<2x32xf32>, vector<32x128xf32>, vector<2x128xf32> -> vector<2x128xf32>
    %40 = arith.addf %38, %39 : vector<2x128xf32>
    %41 = arith.negf %40 : vector<2x128xf32>
    %42 = math.exp %41 : vector<2x128xf32>
    %cst_27 = arith.constant 1.000000e+00 : f32
    %43 = vector.broadcast %cst_27 : f32 to vector<2x128xf32>
    %44 = arith.addf %43, %42 : vector<2x128xf32>
    %45 = arith.divf %43, %44 : vector<2x128xf32>
    %46 = math.tanh %40 : vector<2x128xf32>
    %47 = vector.extract_strided_slice %45 {offsets = [0, 0], sizes = [2, 32], strides = [1, 1]} : vector<2x128xf32> to vector<2x32xf32>
    %48 = vector.extract_strided_slice %45 {offsets = [0, 32], sizes = [2, 32], strides = [1, 1]} : vector<2x128xf32> to vector<2x32xf32>
    %49 = vector.extract_strided_slice %46 {offsets = [0, 64], sizes = [2, 32], strides = [1, 1]} : vector<2x128xf32> to vector<2x32xf32>
    %50 = vector.extract_strided_slice %45 {offsets = [0, 96], sizes = [2, 32], strides = [1, 1]} : vector<2x128xf32> to vector<2x32xf32>
    %51 = arith.mulf %48, %36 : vector<2x32xf32>
    %52 = arith.mulf %47, %49 : vector<2x32xf32>
    %53 = arith.addf %51, %52 : vector<2x32xf32>
    %54 = math.tanh %53 : vector<2x32xf32>
    %55 = arith.mulf %50, %54 : vector<2x32xf32>
    %56 = vector.extract_strided_slice %34 {offsets = [0, 1, 0], sizes = [2, 1, 128], strides = [1, 1, 1]} : vector<2x8x128xf32> to vector<2x1x128xf32>
    %57 = vector.shape_cast %56 : vector<2x1x128xf32> to vector<2x128xf32>
    %cst_28 = arith.constant dense<0.000000e+00> : vector<2x128xf32>
    %58 = tpu.matmul %55, %5, %cst_28 {dimension_numbers = #tpu.dot_dimension_numbers<[1], [0], [0], [1], [0, 0, 1, 1], [], []>} : vector<2x32xf32>, vector<32x128xf32>, vector<2x128xf32> -> vector<2x128xf32>
    %59 = arith.addf %57, %58 : vector<2x128xf32>
    %60 = arith.negf %59 : vector<2x128xf32>
    %61 = math.exp %60 : vector<2x128xf32>
    %cst_29 = arith.constant 1.000000e+00 : f32
    %62 = vector.broadcast %cst_29 : f32 to vector<2x128xf32>
    %63 = arith.addf %62, %61 : vector<2x128xf32>
    %64 = arith.divf %62, %63 : vector<2x128xf32>
    %65 = math.tanh %59 : vector<2x128xf32>
    %66 = vector.extract_strided_slice %64 {offsets = [0, 0], sizes = [2, 32], strides = [1, 1]} : vector<2x128xf32> to vector<2x32xf32>
    %67 = vector.extract_strided_slice %64 {offsets = [0, 32], sizes = [2, 32], strides = [1, 1]} : vector<2x128xf32> to vector<2x32xf32>
    %68 = vector.extract_strided_slice %65 {offsets = [0, 64], sizes = [2, 32], strides = [1, 1]} : vector<2x128xf32> to vector<2x32xf32>
    %69 = vector.extract_strided_slice %64 {offsets = [0, 96], sizes = [2, 32], strides = [1, 1]} : vector<2x128xf32> to vector<2x32xf32>
    %70 = arith.mulf %67, %53 : vector<2x32xf32>
    %71 = arith.mulf %66, %68 : vector<2x32xf32>
    %72 = arith.addf %70, %71 : vector<2x32xf32>
    %73 = math.tanh %72 : vector<2x32xf32>
    %74 = arith.mulf %69, %73 : vector<2x32xf32>
    %75 = vector.extract_strided_slice %34 {offsets = [0, 2, 0], sizes = [2, 1, 128], strides = [1, 1, 1]} : vector<2x8x128xf32> to vector<2x1x128xf32>
    %76 = vector.shape_cast %75 : vector<2x1x128xf32> to vector<2x128xf32>
    %cst_30 = arith.constant dense<0.000000e+00> : vector<2x128xf32>
    %77 = tpu.matmul %74, %5, %cst_30 {dimension_numbers = #tpu.dot_dimension_numbers<[1], [0], [0], [1], [0, 0, 1, 1], [], []>} : vector<2x32xf32>, vector<32x128xf32>, vector<2x128xf32> -> vector<2x128xf32>
    %78 = arith.addf %76, %77 : vector<2x128xf32>
    %79 = arith.negf %78 : vector<2x128xf32>
    %80 = math.exp %79 : vector<2x128xf32>
    %cst_31 = arith.constant 1.000000e+00 : f32
    %81 = vector.broadcast %cst_31 : f32 to vector<2x128xf32>
    %82 = arith.addf %81, %80 : vector<2x128xf32>
    %83 = arith.divf %81, %82 : vector<2x128xf32>
    %84 = math.tanh %78 : vector<2x128xf32>
    %85 = vector.extract_strided_slice %83 {offsets = [0, 0], sizes = [2, 32], strides = [1, 1]} : vector<2x128xf32> to vector<2x32xf32>
    %86 = vector.extract_strided_slice %83 {offsets = [0, 32], sizes = [2, 32], strides = [1, 1]} : vector<2x128xf32> to vector<2x32xf32>
    %87 = vector.extract_strided_slice %84 {offsets = [0, 64], sizes = [2, 32], strides = [1, 1]} : vector<2x128xf32> to vector<2x32xf32>
    %88 = vector.extract_strided_slice %83 {offsets = [0, 96], sizes = [2, 32], strides = [1, 1]} : vector<2x128xf32> to vector<2x32xf32>
    %89 = arith.mulf %86, %72 : vector<2x32xf32>
    %90 = arith.mulf %85, %87 : vector<2x32xf32>
    %91 = arith.addf %89, %90 : vector<2x32xf32>
    %92 = math.tanh %91 : vector<2x32xf32>
    %93 = arith.mulf %88, %92 : vector<2x32xf32>
    %94 = vector.extract_strided_slice %34 {offsets = [0, 3, 0], sizes = [2, 1, 128], strides = [1, 1, 1]} : vector<2x8x128xf32> to vector<2x1x128xf32>
    %95 = vector.shape_cast %94 : vector<2x1x128xf32> to vector<2x128xf32>
    %cst_32 = arith.constant dense<0.000000e+00> : vector<2x128xf32>
    %96 = tpu.matmul %93, %5, %cst_32 {dimension_numbers = #tpu.dot_dimension_numbers<[1], [0], [0], [1], [0, 0, 1, 1], [], []>} : vector<2x32xf32>, vector<32x128xf32>, vector<2x128xf32> -> vector<2x128xf32>
    %97 = arith.addf %95, %96 : vector<2x128xf32>
    %98 = arith.negf %97 : vector<2x128xf32>
    %99 = math.exp %98 : vector<2x128xf32>
    %cst_33 = arith.constant 1.000000e+00 : f32
    %100 = vector.broadcast %cst_33 : f32 to vector<2x128xf32>
    %101 = arith.addf %100, %99 : vector<2x128xf32>
    %102 = arith.divf %100, %101 : vector<2x128xf32>
    %103 = math.tanh %97 : vector<2x128xf32>
    %104 = vector.extract_strided_slice %102 {offsets = [0, 0], sizes = [2, 32], strides = [1, 1]} : vector<2x128xf32> to vector<2x32xf32>
    %105 = vector.extract_strided_slice %102 {offsets = [0, 32], sizes = [2, 32], strides = [1, 1]} : vector<2x128xf32> to vector<2x32xf32>
    %106 = vector.extract_strided_slice %103 {offsets = [0, 64], sizes = [2, 32], strides = [1, 1]} : vector<2x128xf32> to vector<2x32xf32>
    %107 = vector.extract_strided_slice %102 {offsets = [0, 96], sizes = [2, 32], strides = [1, 1]} : vector<2x128xf32> to vector<2x32xf32>
    %108 = arith.mulf %105, %91 : vector<2x32xf32>
    %109 = arith.mulf %104, %106 : vector<2x32xf32>
    %110 = arith.addf %108, %109 : vector<2x32xf32>
    %111 = math.tanh %110 : vector<2x32xf32>
    %112 = arith.mulf %107, %111 : vector<2x32xf32>
    %113 = vector.extract_strided_slice %34 {offsets = [0, 4, 0], sizes = [2, 1, 128], strides = [1, 1, 1]} : vector<2x8x128xf32> to vector<2x1x128xf32>
    %114 = vector.shape_cast %113 : vector<2x1x128xf32> to vector<2x128xf32>
    %cst_34 = arith.constant dense<0.000000e+00> : vector<2x128xf32>
    %115 = tpu.matmul %112, %5, %cst_34 {dimension_numbers = #tpu.dot_dimension_numbers<[1], [0], [0], [1], [0, 0, 1, 1], [], []>} : vector<2x32xf32>, vector<32x128xf32>, vector<2x128xf32> -> vector<2x128xf32>
    %116 = arith.addf %114, %115 : vector<2x128xf32>
    %117 = arith.negf %116 : vector<2x128xf32>
    %118 = math.exp %117 : vector<2x128xf32>
    %cst_35 = arith.constant 1.000000e+00 : f32
    %119 = vector.broadcast %cst_35 : f32 to vector<2x128xf32>
    %120 = arith.addf %119, %118 : vector<2x128xf32>
    %121 = arith.divf %119, %120 : vector<2x128xf32>
    %122 = math.tanh %116 : vector<2x128xf32>
    %123 = vector.extract_strided_slice %121 {offsets = [0, 0], sizes = [2, 32], strides = [1, 1]} : vector<2x128xf32> to vector<2x32xf32>
    %124 = vector.extract_strided_slice %121 {offsets = [0, 32], sizes = [2, 32], strides = [1, 1]} : vector<2x128xf32> to vector<2x32xf32>
    %125 = vector.extract_strided_slice %122 {offsets = [0, 64], sizes = [2, 32], strides = [1, 1]} : vector<2x128xf32> to vector<2x32xf32>
    %126 = vector.extract_strided_slice %121 {offsets = [0, 96], sizes = [2, 32], strides = [1, 1]} : vector<2x128xf32> to vector<2x32xf32>
    %127 = arith.mulf %124, %110 : vector<2x32xf32>
    %128 = arith.mulf %123, %125 : vector<2x32xf32>
    %129 = arith.addf %127, %128 : vector<2x32xf32>
    %130 = math.tanh %129 : vector<2x32xf32>
    %131 = arith.mulf %126, %130 : vector<2x32xf32>
    %132 = vector.extract_strided_slice %34 {offsets = [0, 5, 0], sizes = [2, 1, 128], strides = [1, 1, 1]} : vector<2x8x128xf32> to vector<2x1x128xf32>
    %133 = vector.shape_cast %132 : vector<2x1x128xf32> to vector<2x128xf32>
    %cst_36 = arith.constant dense<0.000000e+00> : vector<2x128xf32>
    %134 = tpu.matmul %131, %5, %cst_36 {dimension_numbers = #tpu.dot_dimension_numbers<[1], [0], [0], [1], [0, 0, 1, 1], [], []>} : vector<2x32xf32>, vector<32x128xf32>, vector<2x128xf32> -> vector<2x128xf32>
    %135 = arith.addf %133, %134 : vector<2x128xf32>
    %136 = arith.negf %135 : vector<2x128xf32>
    %137 = math.exp %136 : vector<2x128xf32>
    %cst_37 = arith.constant 1.000000e+00 : f32
    %138 = vector.broadcast %cst_37 : f32 to vector<2x128xf32>
    %139 = arith.addf %138, %137 : vector<2x128xf32>
    %140 = arith.divf %138, %139 : vector<2x128xf32>
    %141 = math.tanh %135 : vector<2x128xf32>
    %142 = vector.extract_strided_slice %140 {offsets = [0, 0], sizes = [2, 32], strides = [1, 1]} : vector<2x128xf32> to vector<2x32xf32>
    %143 = vector.extract_strided_slice %140 {offsets = [0, 32], sizes = [2, 32], strides = [1, 1]} : vector<2x128xf32> to vector<2x32xf32>
    %144 = vector.extract_strided_slice %141 {offsets = [0, 64], sizes = [2, 32], strides = [1, 1]} : vector<2x128xf32> to vector<2x32xf32>
    %145 = vector.extract_strided_slice %140 {offsets = [0, 96], sizes = [2, 32], strides = [1, 1]} : vector<2x128xf32> to vector<2x32xf32>
    %146 = arith.mulf %143, %129 : vector<2x32xf32>
    %147 = arith.mulf %142, %144 : vector<2x32xf32>
    %148 = arith.addf %146, %147 : vector<2x32xf32>
    %149 = math.tanh %148 : vector<2x32xf32>
    %150 = arith.mulf %145, %149 : vector<2x32xf32>
    %151 = vector.extract_strided_slice %34 {offsets = [0, 6, 0], sizes = [2, 1, 128], strides = [1, 1, 1]} : vector<2x8x128xf32> to vector<2x1x128xf32>
    %152 = vector.shape_cast %151 : vector<2x1x128xf32> to vector<2x128xf32>
    %cst_38 = arith.constant dense<0.000000e+00> : vector<2x128xf32>
    %153 = tpu.matmul %150, %5, %cst_38 {dimension_numbers = #tpu.dot_dimension_numbers<[1], [0], [0], [1], [0, 0, 1, 1], [], []>} : vector<2x32xf32>, vector<32x128xf32>, vector<2x128xf32> -> vector<2x128xf32>
    %154 = arith.addf %152, %153 : vector<2x128xf32>
    %155 = arith.negf %154 : vector<2x128xf32>
    %156 = math.exp %155 : vector<2x128xf32>
    %cst_39 = arith.constant 1.000000e+00 : f32
    %157 = vector.broadcast %cst_39 : f32 to vector<2x128xf32>
    %158 = arith.addf %157, %156 : vector<2x128xf32>
    %159 = arith.divf %157, %158 : vector<2x128xf32>
    %160 = math.tanh %154 : vector<2x128xf32>
    %161 = vector.extract_strided_slice %159 {offsets = [0, 0], sizes = [2, 32], strides = [1, 1]} : vector<2x128xf32> to vector<2x32xf32>
    %162 = vector.extract_strided_slice %159 {offsets = [0, 32], sizes = [2, 32], strides = [1, 1]} : vector<2x128xf32> to vector<2x32xf32>
    %163 = vector.extract_strided_slice %160 {offsets = [0, 64], sizes = [2, 32], strides = [1, 1]} : vector<2x128xf32> to vector<2x32xf32>
    %164 = vector.extract_strided_slice %159 {offsets = [0, 96], sizes = [2, 32], strides = [1, 1]} : vector<2x128xf32> to vector<2x32xf32>
    %165 = arith.mulf %162, %148 : vector<2x32xf32>
    %166 = arith.mulf %161, %163 : vector<2x32xf32>
    %167 = arith.addf %165, %166 : vector<2x32xf32>
    %168 = math.tanh %167 : vector<2x32xf32>
    %169 = arith.mulf %164, %168 : vector<2x32xf32>
    %170 = vector.extract_strided_slice %34 {offsets = [0, 7, 0], sizes = [2, 1, 128], strides = [1, 1, 1]} : vector<2x8x128xf32> to vector<2x1x128xf32>
    %171 = vector.shape_cast %170 : vector<2x1x128xf32> to vector<2x128xf32>
    %cst_40 = arith.constant dense<0.000000e+00> : vector<2x128xf32>
    %172 = tpu.matmul %169, %5, %cst_40 {dimension_numbers = #tpu.dot_dimension_numbers<[1], [0], [0], [1], [0, 0, 1, 1], [], []>} : vector<2x32xf32>, vector<32x128xf32>, vector<2x128xf32> -> vector<2x128xf32>
    %173 = arith.addf %171, %172 : vector<2x128xf32>
    %174 = arith.negf %173 : vector<2x128xf32>
    %175 = math.exp %174 : vector<2x128xf32>
    %cst_41 = arith.constant 1.000000e+00 : f32
    %176 = vector.broadcast %cst_41 : f32 to vector<2x128xf32>
    %177 = arith.addf %176, %175 : vector<2x128xf32>
    %178 = arith.divf %176, %177 : vector<2x128xf32>
    %179 = math.tanh %173 : vector<2x128xf32>
    %180 = vector.extract_strided_slice %178 {offsets = [0, 0], sizes = [2, 32], strides = [1, 1]} : vector<2x128xf32> to vector<2x32xf32>
    %181 = vector.extract_strided_slice %178 {offsets = [0, 32], sizes = [2, 32], strides = [1, 1]} : vector<2x128xf32> to vector<2x32xf32>
    %182 = vector.extract_strided_slice %179 {offsets = [0, 64], sizes = [2, 32], strides = [1, 1]} : vector<2x128xf32> to vector<2x32xf32>
    %183 = vector.extract_strided_slice %178 {offsets = [0, 96], sizes = [2, 32], strides = [1, 1]} : vector<2x128xf32> to vector<2x32xf32>
    %184 = arith.mulf %181, %167 : vector<2x32xf32>
    %185 = arith.mulf %180, %182 : vector<2x32xf32>
    %186 = arith.addf %184, %185 : vector<2x32xf32>
    %187 = math.tanh %186 : vector<2x32xf32>
    %188 = arith.mulf %183, %187 : vector<2x32xf32>
    %cst_42 = arith.constant dense<0.000000e+00> : vector<2x128xf32>
    %189 = tpu.matmul %188, %6, %cst_42 {dimension_numbers = #tpu.dot_dimension_numbers<[1], [0], [0], [1], [0, 0, 1, 1], [], []>} : vector<2x32xf32>, vector<32x128xf32>, vector<2x128xf32> -> vector<2x128xf32>
    %190 = vector.broadcast %11 : vector<1x128xf32> to vector<2x128xf32>
    %191 = arith.addf %189, %190 : vector<2x128xf32>
    %192 = vector.extract_strided_slice %191 {offsets = [0, 64], sizes = [2, 64], strides = [1, 1]} : vector<2x128xf32> to vector<2x64xf32>
    %193 = tpu.concatenate %188, %186, %192 in 1 : vector<2x32xf32>, vector<2x32xf32>, vector<2x64xf32> -> vector<2x128xf32>
    %c0_43 = arith.constant 0 : index
    %c0_44 = arith.constant 0 : index
    %194 = vector.load %arg4[%c0_43, %c0_44] : memref<2x128xf32, #tpu.memory_space<vmem>>, vector<2x128xf32>
    tpu.vector_store %arg4[%c0_43, %c0_44], %193 {strides = array<i32>} : memref<2x128xf32, #tpu.memory_space<vmem>>, vector<2x128xf32>,
    return
  }
}

</mosaic_0001>

<llo_original>
// kernel: qnet_forward.1
$region0: #{qnet_forward.1}
  #allocation0 [shape = 'u32[]', space=smem, size = 0x4, offset = 0x4, fixed_abs, tag = 'smem constant byte address 0x4 - core index']
  #allocation1 [shape = 'u32[72,128]{1,0:T(1,128)}', space=vmem, size = 0x9000, scoped, tag = 'internal scratch']
  %s0 = inlined_call_operand.vmem [shape: f32[16,6], index: 0, kind: input, shape index: {}]
  %s1 = inlined_call_operand.vmem [shape: f32[16,10], index: 1, kind: input, shape index: {}]
  %s2 = inlined_call_operand.hbm [shape: f32[480,128], index: 2, kind: input, shape index: {}]
  %s3 = inlined_call_operand.vmem [shape: f32[2,128], index: 3, kind: input, shape index: {}, may-alias: {3,4}]
  %s4 = inlined_call_operand.vmem [shape: f32[2,128], index: 4, kind: output, shape index: {}, may-alias: {3,4}]
  %s5 = sld [smem:[#allocation0]]
  $region30: #{qnet_forward.1} parent=0
    _
  %s7 = ssub.s32 1, %s5
  %s8 = scalar_select 0, %s7, %s5
  $region1: #{qnet_forward.1} parent=0
    #allocation2 [shape = 'u8[245760]{0}', space=vmem, size = 0x3c000, scoped, tag = 'input window, operand 2, single buffered']
    #allocation3 [shape = 's32[1]{0}', space=sflag, size = 0x4, scoped, tag = 'scoped memory for qnet_forward.1']
    %9 = vsyncpa [#allocation3], 0
    // Predicated region
    $region2: #{qnet_forward.1} parent=1 // pred_check
      _
    $region3: #{qnet_forward.1} parent=1 // pred_check_branch
      %11 = sbr.rel (0) target = $region5
    $region4: #{qnet_forward.1} parent=1 // pred_region
      _
    $region5: #{qnet_forward.1} parent=1 // pred_fallthru
      _
    // Predicated region
    $region6: #{qnet_forward.1} parent=1 // pred_check
      _
    $region7: #{qnet_forward.1} parent=1 // pred_check_branch
      %13 = sbr.rel (0) target = $region9
    $region8: #{qnet_forward.1} parent=1 // pred_region
      _
    $region9: #{qnet_forward.1} parent=1 // pred_fallthru
      _
    // Predicated region
    $region10: #{qnet_forward.1} parent=1 // pred_check
      _
    $region11: #{qnet_forward.1} parent=1 // pred_check_branch
      %15 = sbr.rel (0) target = $region13
    $region12: #{qnet_forward.1} parent=1 // pred_region
      %17 = vsyncadd [#allocation3], 0
      %s18 = sshll.u32 %s2, 4
      %s19 = int_to_ptr.hbm [resolvable:$true] %s18
      %s20 = sshll.u32 [#allocation2], 4
      %s21 = int_to_ptr.vmem [resolvable:$true] %s20
      %26 = dma.hbm_to_vmem [thread:$0]  %s19, 7680, %s21, [#allocation3], 128, 128, 8
    $region13: #{qnet_forward.1} parent=1 // pred_fallthru
      _
    // Predicated region
    $region14: #{qnet_forward.1} parent=1 // pred_check
      _
    $region15: #{qnet_forward.1} parent=1 // pred_check_branch
      %28 = sbr.rel (0) target = $region17
    $region16: #{qnet_forward.1} parent=1 // pred_region
      _
    $region17: #{qnet_forward.1} parent=1 // pred_fallthru
      _
    // Predicated region
    $region18: #{qnet_forward.1} parent=1 // pred_check
      _
    $region19: #{qnet_forward.1} parent=1 // pred_check_branch
      %30 = sbr.rel (0) target = $region21
    $region20: #{qnet_forward.1} parent=1 // pred_region
      %32 = dma.done [#allocation3], 7680
    $region21: #{qnet_forward.1} parent=1 // pred_fallthru
      _
    %v33 = vld [vmem:[#allocation2] sm:$0x3f]
    %v34 = vld [vmem:[#allocation2 + $0x8] sm:$0xff]
    %v35 = vld [vmem:[#allocation2 + $0x10] sm:$0x3]
    %v36 = vld [vmem:[#allocation2 + $0x18] sm:$0xff]
    %v37 = vld [vmem:[#allocation2 + $0x20] sm:$0xff]
    %v38 = vld [vmem:[#allocation2 + $0x28] sm:$0xff]
    %v39 = vld [vmem:[#allocation2 + $0x30] sm:$0xff]
    %v40 = vld [vmem:[#allocation2 + $0x38] sm:$0xff]
    %v41 = vld [vmem:[#allocation2 + $0x40] sm:$0xff]
    %v42 = vld [vmem:[#allocation2 + $0x48] sm:$0xff]
    %v43 = vld [vmem:[#allocation2 + $0x50] sm:$0xff]
    %v44 = vld [vmem:[#allocation2 + $0x58] sm:$0xff]
    %v45 = vld [vmem:[#allocation2 + $0x60] sm:$0xff]
    %v46 = vld [vmem:[#allocation2 + $0x68] sm:$0xff]
    %v47 = vld [vmem:[#allocation2 + $0x70] sm:$0xff]
    %v48 = vld [vmem:[#allocation2 + $0x78] sm:$0xff]
    %v49 = vld [vmem:[#allocation2 + $0x80] sm:$0xff]
    %v50 = vld [vmem:[#allocation2 + $0x88] sm:$0xff]
    %v51 = vld [vmem:[#allocation2 + $0x90] sm:$0xff]
    %v52 = vld [vmem:[#allocation2 + $0x98] sm:$0xff]
    %v53 = vld [vmem:[#allocation2 + $0xa0] sm:$0xff]
    %v54 = vld [vmem:[#allocation2 + $0xa8] sm:$0xff]
    %v55 = vld [vmem:[#allocation2 + $0xb0] sm:$0xff]
    %v56 = vld [vmem:[#allocation2 + $0xb8] sm:$0xff]
    %v57 = vld [vmem:[#allocation2 + $0xc0] sm:$0xff]
    %v58 = vld [vmem:[#allocation2 + $0xc8] sm:$0xff]
    %v59 = vld [vmem:[#allocation2 + $0xd0] sm:$0xff]
    %v60 = vld [vmem:[#allocation2 + $0xd8] sm:$0xff]
    %v61 = vld [vmem:[#allocation2 + $0xe0] sm:$0xff]
    %v62 = vld [vmem:[#allocation2 + $0xe8] sm:$0xff]
    %v63 = vld [vmem:[#allocation2 + $0xf0] sm:$0xff]
    %v64 = vld [vmem:[#allocation2 + $0xf8] sm:$0xff]
    %v65 = vld [vmem:[#allocation2 + $0x100] sm:$0xff]
    %v66 = vld [vmem:[#allocation2 + $0x108] sm:$0xff]
    %v67 = vld [vmem:[#allocation2 + $0x110] sm:$0xff]
    %v68 = vld [vmem:[#allocation2 + $0x118] sm:$0xff]
    %v69 = vld [vmem:[#allocation2 + $0x120] sm:$0xff]
    %v70 = vld [vmem:[#allocation2 + $0x128] sm:$0xff]
    %v71 = vld [vmem:[#allocation2 + $0x130] sm:$0xff]
    %v72 = vld [vmem:[#allocation2 + $0x138] sm:$0xff]
    %v73 = vld [vmem:[#allocation2 + $0x140] sm:$0xff]
    %v74 = vld [vmem:[#allocation2 + $0x148] sm:$0xff]
    %v75 = vld [vmem:[#allocation2 + $0x150] sm:$0xff]
    %v76 = vld [vmem:[#allocation2 + $0x158] sm:$0xff]
    %v77 = vld [vmem:[#allocation2 + $0x160] sm:$0xff]
    %v78 = vld [vmem:[#allocation2 + $0x168] sm:$0xff]
    %v79 = vld [vmem:[#allocation2 + $0x170] sm:$0xff]
    %v80 = vld [vmem:[#allocation2 + $0x178] sm:$0xff]
    %v81 = vld [vmem:[#allocation2 + $0x180] sm:$0xff]
    %v82 = vld [vmem:[#allocation2 + $0x188] sm:$0xff]
    %v83 = vld [vmem:[#allocation2 + $0x190] sm:$0xff]
    %v84 = vld [vmem:[#allocation2 + $0x198] sm:$0xff]
    %v85 = vld [vmem:[#allocation2 + $0x1a0] sm:$0xff]
    %v86 = vld [vmem:[#allocation2 + $0x1a8] sm:$0xff]
    %v87 = vld [vmem:[#allocation2 + $0x1b0] sm:$0xff]
    %v88 = vld [vmem:[#allocation2 + $0x1b8] sm:$0xff]
    %v89 = vld [vmem:[#allocation2 + $0x1c0] sm:$0xff]
    %v90 = vld [vmem:[#allocation2 + $0x1c8] sm:$0xff]
    %v91 = vld [vmem:[#allocation2 + $0x1d0] sm:$0xff]
    %v92 = vld [vmem:[#allocation2 + $0x1d8] sm:$0x1]
    %v93 = vld [vmem:[#allocation2 + $0x1d9] sm:$0x1]
    %v94 = vld [vmem:[#allocation2 + $0x1da] sm:$0x1]
    %v95 = vld [vmem:[#allocation2 + $0x1db] sm:$0x1]
    %v96 = vld [vmem:[#allocation2 + $0x1dc] sm:$0x1]
    %v97 = vld [vmem:[%s0] sm:$0xff]
    %v98 = vld [vmem:[%s0 + $0x8] sm:$0xff]
    %v99 = vld [vmem:[%s1] sm:$0xff]
    %v100 = vld [vmem:[%s1 + $0x8] sm:$0xff]
    %vm101 = vcmask 80896
    %v103 = vsel %vm101, %v99, 0
    %v106 = vsel %vm101, %v100, 0
    %vm108 = vcmask 1041408
    %v110 = vsel %vm108, %v35, 0
    %112 = vmatpush.msra.mxu0 0.0
    %113 = vmatpush.msra.mxu0 0.0
    %114 = vmatpush.msra.mxu0 0.0
    %115 = vmatpush.msra.mxu0 0.0
    %116 = vmatpush.msra.mxu0 0.0
    %117 = vmatpush.msra.mxu0 0.0
    %118 = vmatpush.msra.mxu0 0.0
    %119 = vmatpush.msra.mxu0 0.0
    %120 = vmatpush.msra.mxu0 0.0
    %121 = vmatpush.msra.mxu0 0.0
    %122 = vmatpush.msra.mxu0 0.0
    %123 = vmatpush.msra.mxu0 0.0
    %124 = vmatpush.msra.mxu0 0.0
    %125 = vmatpush.msra.mxu0 0.0
    %126 = vmatpush.msra.mxu0 %v110
    %127 = vmatpush.msra.mxu0 %v34
    %128 = vmatmul.f32.gmra.mxu0 %v103
    %v129 = vpop.f32.mrf.mxu0
    %v130 = vadd.f32 0.0, %v129
    %131 = vmatmul.f32.gmra.mxu0 %v106
    %v132 = vpop.f32.mrf.mxu0
    %v133 = vadd.f32 0.0, %v132
    %134 = vdwg.mxu0
    %vm135 = vcmask 48128
    %v137 = vsel %vm135, %v97, 0
    %v140 = vsel %vm135, %v98, 0
    %vm142 = vcmask 1045504
    %v144 = vsel %vm142, %v33, 0
    %146 = vmatpush.msra.mxu0 0.0
    %147 = vmatpush.msra.mxu0 0.0
    %148 = vmatpush.msra.mxu0 0.0
    %149 = vmatpush.msra.mxu0 0.0
    %150 = vmatpush.msra.mxu0 0.0
    %151 = vmatpush.msra.mxu0 0.0
    %152 = vmatpush.msra.mxu0 0.0
    %153 = vmatpush.msra.mxu0 0.0
    %154 = vmatpush.msra.mxu0 0.0
    %155 = vmatpush.msra.mxu0 0.0
    %156 = vmatpush.msra.mxu0 0.0
    %157 = vmatpush.msra.mxu0 0.0
    %158 = vmatpush.msra.mxu0 0.0
    %159 = vmatpush.msra.mxu0 0.0
    %160 = vmatpush.msra.mxu0 0.0
    %161 = vmatpush.msra.mxu0 %v144
    %162 = vmatmul.f32.gmra.mxu0 %v137
    %v163 = vpop.f32.mrf.mxu0
    %v164 = vadd.f32 %v130, %v163
    %165 = vmatmul.f32.gmra.mxu0 %v140
    %v166 = vpop.f32.mrf.mxu0
    %v167 = vadd.f32 %v133, %v166
    %168 = vdwg.mxu0
    %v169 = vperm.slane %v92, 0
    %v170 = vadd.f32 %v164, %v169
    %v171 = vadd.f32 %v167, %v169
    %v172 = vmax.f32 %v170, 0.0
    %v173 = vmax.f32 %v171, 0.0
    %v174 = vperm.slane %v93, 0
    %175 = vmatpush.msra.mxu0 %v51
    %176 = vmatpush.msra.mxu0 %v50
    %177 = vmatpush.msra.mxu0 %v49
    %178 = vmatpush.msra.mxu0 %v48
    %179 = vmatpush.msra.mxu0 %v47
    %180 = vmatpush.msra.mxu0 %v46
    %181 = vmatpush.msra.mxu0 %v45
    %182 = vmatpush.msra.mxu0 %v44
    %183 = vmatpush.msra.mxu0 %v43
    %184 = vmatpush.msra.mxu0 %v42
    %185 = vmatpush.msra.mxu0 %v41
    %186 = vmatpush.msra.mxu0 %v40
    %187 = vmatpush.msra.mxu0 %v39
    %188 = vmatpush.msra.mxu0 %v38
    %189 = vmatpush.msra.mxu0 %v37
    %190 = vmatpush.msra.mxu0 %v36
    %191 = vmatmul.f32.gmra.mxu0 %v172
    %v192 = vpop.f32.mrf.mxu0
    %v193 = vadd.f32 %v174, %v192
    %194 = vmatmul.f32.gmra.mxu0 %v173
    %v195 = vpop.f32.mrf.mxu0
    %v196 = vadd.f32 %v174, %v195
    %197 = vdwg.mxu0
    %v198 = vmax.f32 %v193, 0.0
    %v199 = vmax.f32 %v196, 0.0
    %v200 = vperm.slane %v94, 0
    %201 = vmatpush.msra.mxu0 %v67
    %202 = vmatpush.msra.mxu0 %v66
    %203 = vmatpush.msra.mxu0 %v65
    %204 = vmatpush.msra.mxu0 %v64
    %205 = vmatpush.msra.mxu0 %v63
    %206 = vmatpush.msra.mxu0 %v62
    %207 = vmatpush.msra.mxu0 %v61
    %208 = vmatpush.msra.mxu0 %v60
    %209 = vmatpush.msra.mxu0 %v59
    %210 = vmatpush.msra.mxu0 %v58
    %211 = vmatpush.msra.mxu0 %v57
    %212 = vmatpush.msra.mxu0 %v56
    %213 = vmatpush.msra.mxu0 %v55
    %214 = vmatpush.msra.mxu0 %v54
    %215 = vmatpush.msra.mxu0 %v53
    %216 = vmatpush.msra.mxu0 %v52
    %217 = vmatmul.f32.gmra.mxu0 %v198
    %v218 = vpop.f32.mrf.mxu0
    %v219 = vadd.f32 %v200, %v218
    %220 = vmatmul.f32.gmra.mxu0 %v199
    %v221 = vpop.f32.mrf.mxu0
    %v222 = vadd.f32 %v200, %v221
    %223 = vdwg.mxu0
    %v224 = vmax.f32 %v219, 0.0
    %v225 = vmax.f32 %v222, 0.0
    %v226 = vperm.slane %v95, 0
    %227 = vmatpush.msra.mxu0 %v83
    %228 = vmatpush.msra.mxu0 %v82
    %229 = vmatpush.msra.mxu0 %v81
    %230 = vmatpush.msra.mxu0 %v80
    %231 = vmatpush.msra.mxu0 %v79
    %232 = vmatpush.msra.mxu0 %v78
    %233 = vmatpush.msra.mxu0 %v77
    %234 = vmatpush.msra.mxu0 %v76
    %235 = vmatpush.msra.mxu0 %v75
    %236 = vmatpush.msra.mxu0 %v74
    %237 = vmatpush.msra.mxu0 %v73
    %238 = vmatpush.msra.mxu0 %v72
    %239 = vmatpush.msra.mxu0 %v71
    %240 = vmatpush.msra.mxu0 %v70
    %241 = vmatpush.msra.mxu0 %v69
    %242 = vmatpush.msra.mxu0 %v68
    %243 = vmatmul.f32.gmra.mxu0 %v224
    %v244 = vpop.f32.mrf.mxu0
    %v245 = vadd.f32 %v226, %v244
    %246 = vmatmul.f32.gmra.mxu0 %v225
    %v247 = vpop.f32.mrf.mxu0
    %v248 = vadd.f32 %v226, %v247
    %249 = vdwg.mxu0
    %v250 = vld [vmem:[%s3] sm:$0x3]
    %vm251 = vcmask 261120
    %v253 = vsel %vm251, %v250, 0
    %255 = vmatpush.msra.mxu0 0.0
    %256 = vmatpush.msra.mxu0 0.0
    %257 = vmatpush.msra.mxu0 0.0
    %258 = vmatpush.msra.mxu0 0.0
    %259 = vmatpush.msra.mxu0 0.0
    %260 = vmatpush.msra.mxu0 0.0
    %261 = vmatpush.msra.mxu0 0.0
    %262 = vmatpush.msra.mxu0 0.0
    %263 = vmatpush.msra.mxu0 0.0
    %264 = vmatpush.msra.mxu0 0.0
    %265 = vmatpush.msra.mxu0 0.0
    %266 = vmatpush.msra.mxu0 0.0
    %267 = vmatpush.msra.mxu0 %v87
    %268 = vmatpush.msra.mxu0 %v86
    %269 = vmatpush.msra.mxu0 %v85
    %270 = vmatpush.msra.mxu0 %v84
    %271 = vmatmul.f32.gmra.mxu0 %v253
    %v272 = vpop.f32.mrf.mxu0
    %v273 = vadd.f32 0.0, %v272
    %274 = vdwg.mxu0
    %v276 = vrot.slane %v273, 1
    %v279 = vadd.f32 %v245, %v273
    %v280 = vadd.f32 %v248, %v276
    %v281 = vxor.u32 %v279, 2147483648
    %v282 = vxor.u32 %v280, 2147483648
    %v283 = vmul.f32 %v281, 1.442695
    %v284 = vpow.pop %v283
    %v285 = vmul.f32 %v282, 1.442695
    %v286 = vpow.pop %v285
    %v287 = vadd.f32 %v284, 1.0
    %v288 = vadd.f32 %v286, 1.0
    %v289 = vrcp.pop %v287
    %v290 = vmul.f32 %v287, %v289
    %v291 = vsub.f32 1.0, %v290
    %v292 = vmul.f32 %v289, %v291
    %v293 = vadd.f32 %v289, %v292
    %vm294 = vweird.f32 %v287
    %vm295 = vweird.f32 %v289
    %vm296 = vmor %vm294, %vm295
    %v297 = vsel %vm296, %v289, %v293
    %v298 = vand.u32 2147483647, %v287
    %vm299 = vcmp.eq.f32.partialorder %v298, 8.507059e+37
    %v300 = vand.u32 %v287, 2147483648
    %v301 = vor.u32 1.1754944e-38, %v300
    %v302 = vsel %vm299, %v301, %v297
    %v303 = vmul.f32 1.0, %v302
    %v304 = vrcp.pop %v288
    %v305 = vmul.f32 %v288, %v304
    %v306 = vsub.f32 1.0, %v305
    %v307 = vmul.f32 %v304, %v306
    %v308 = vadd.f32 %v304, %v307
    %vm309 = vweird.f32 %v288
    %vm310 = vweird.f32 %v304
    %vm311 = vmor %vm309, %vm310
    %v312 = vsel %vm311, %v304, %v308
    %v313 = vand.u32 2147483647, %v288
    %vm314 = vcmp.eq.f32.partialorder %v313, 8.507059e+37
    %v315 = vand.u32 %v288, 2147483648
    %v316 = vor.u32 1.1754944e-38, %v315
    %v317 = vsel %vm314, %v316, %v312
    %v318 = vmul.f32 1.0, %v317
    %v319 = vtanh.pop %v279
    %v320 = vtanh.pop %v280
    %v321 = vrot.slane %v250, 1
    %v324 = vmul.f32 %v303, %v250
    %v325 = vmul.f32 %v318, %v321
    %328 = vrot.lane.b32.xlu0 %v319, 64
    %v329 = vpop.permute.xlu0 %328
    %330 = vrot.lane.b32.xlu0 %v320, 64
    %v331 = vpop.permute.xlu0 %330
    %v334 = vmul.f32 %v303, %v329
    %v335 = vmul.f32 %v318, %v331
    %338 = vrot.lane.b32.xlu0 %v334, 32
    %v339 = vpop.permute.xlu0 %338
    %340 = vrot.lane.b32.xlu0 %v335, 32
    %v341 = vpop.permute.xlu0 %340
    %v344 = vadd.f32 %v324, %v339
    %v345 = vadd.f32 %v325, %v341
    %v346 = vtanh.pop %v344
    %v347 = vtanh.pop %v345
    %350 = vrot.lane.b32.xlu0 %v346, 64
    %v351 = vpop.permute.xlu0 %350
    %352 = vrot.lane.b32.xlu0 %v347, 64
    %v353 = vpop.permute.xlu0 %352
    %v356 = vmul.f32 %v303, %v351
    %v357 = vmul.f32 %v318, %v353
    %v360 = vrot.slane %v357, 7
    %vm361 = vcmask 1041409
    %v362 = vsel %vm361, %v360, %v356
    %363 = vrot.lane.b32.xlu0 %v362, 32
    %v364 = vpop.permute.xlu0 %363
    %v365 = vsel %vm251, %v364, 0
    %367 = vmatpush.msra.mxu0 0.0
    %368 = vmatpush.msra.mxu0 0.0
    %369 = vmatpush.msra.mxu0 0.0
    %370 = vmatpush.msra.mxu0 0.0
    %371 = vmatpush.msra.mxu0 0.0
    %372 = vmatpush.msra.mxu0 0.0
    %373 = vmatpush.msra.mxu0 0.0
    %374 = vmatpush.msra.mxu0 0.0
    %375 = vmatpush.msra.mxu0 0.0
    %376 = vmatpush.msra.mxu0 0.0
    %377 = vmatpush.msra.mxu0 0.0
    %378 = vmatpush.msra.mxu0 0.0
    %379 = vmatpush.msra.mxu0 %v87
    %380 = vmatpush.msra.mxu0 %v86
    %381 = vmatpush.msra.mxu0 %v85
    %382 = vmatpush.msra.mxu0 %v84
    %383 = vmatmul.f32.gmra.mxu0 %v365
    %v384 = vpop.f32.mrf.mxu0
    %v385 = vadd.f32 0.0, %v384
    %386 = vdwg.mxu0
    %v388 = vrot.slane %v385, 7
    %v391 = vadd.f32 %v245, %v388
    %v392 = vadd.f32 %v248, %v385
    %v393 = vxor.u32 %v391, 2147483648
    %v394 = vxor.u32 %v392, 2147483648
    %v395 = vmul.f32 %v393, 1.442695
    %v396 = vpow.pop %v395
    %v397 = vmul.f32 %v394, 1.442695
    %v398 = vpow.pop %v397
    %v399 = vadd.f32 %v396, 1.0
    %v400 = vadd.f32 %v398, 1.0
    %v401 = vrcp.pop %v399
    %v402 = vmul.f32 %v399, %v401
    %v403 = vsub.f32 1.0, %v402
    %v404 = vmul.f32 %v401, %v403
    %v405 = vadd.f32 %v401, %v404
    %vm406 = vweird.f32 %v399
    %vm407 = vweird.f32 %v401
    %vm408 = vmor %vm406, %vm407
    %v409 = vsel %vm408, %v401, %v405
    %v410 = vand.u32 2147483647, %v399
    %vm411 = vcmp.eq.f32.partialorder %v410, 8.507059e+37
    %v412 = vand.u32 %v399, 2147483648
    %v413 = vor.u32 1.1754944e-38, %v412
    %v414 = vsel %vm411, %v413, %v409
    %v415 = vmul.f32 1.0, %v414
    %v416 = vrcp.pop %v400
    %v417 = vmul.f32 %v400, %v416
    %v418 = vsub.f32 1.0, %v417
    %v419 = vmul.f32 %v416, %v418
    %v420 = vadd.f32 %v416, %v419
    %vm421 = vweird.f32 %v400
    %vm422 = vweird.f32 %v416
    %vm423 = vmor %vm421, %vm422
    %v424 = vsel %vm423, %v416, %v420
    %v425 = vand.u32 2147483647, %v400
    %vm426 = vcmp.eq.f32.partialorder %v425, 8.507059e+37
    %v427 = vand.u32 %v400, 2147483648
    %v428 = vor.u32 1.1754944e-38, %v427
    %v429 = vsel %vm426, %v428, %v424
    %v430 = vmul.f32 1.0, %v429
    %v431 = vtanh.pop %v391
    %v432 = vtanh.pop %v392
    %v435 = vrot.slane %v344, 7
    %v436 = vrot.slane %v345, 7
    %v439 = vmul.f32 %v415, %v435
    %v440 = vmul.f32 %v430, %v436
    %443 = vrot.lane.b32.xlu0 %v431, 64
    %v444 = vpop.permute.xlu0 %443
    %445 = vrot.lane.b32.xlu0 %v432, 64
    %v446 = vpop.permute.xlu0 %445
    %v449 = vmul.f32 %v415, %v444
    %v450 = vmul.f32 %v430, %v446
    %453 = vrot.lane.b32.xlu0 %v449, 32
    %v454 = vpop.permute.xlu0 %453
    %455 = vrot.lane.b32.xlu0 %v450, 32
    %v456 = vpop.permute.xlu0 %455
    %v459 = vadd.f32 %v439, %v454
    %v460 = vadd.f32 %v440, %v456
    %v461 = vtanh.pop %v459
    %v462 = vtanh.pop %v460
    %465 = vrot.lane.b32.xlu0 %v461, 64
    %v466 = vpop.permute.xlu0 %465
    %467 = vrot.lane.b32.xlu0 %v462, 64
    %v468 = vpop.permute.xlu0 %467
    %v471 = vmul.f32 %v415, %v466
    %v472 = vmul.f32 %v430, %v468
    %v475 = vrot.slane %v471, 1
    %v476 = vsel %vm361, %v472, %v475
    %477 = vrot.lane.b32.xlu0 %v476, 32
    %v478 = vpop.permute.xlu0 %477
    %v479 = vsel %vm251, %v478, 0
    %481 = vmatpush.msra.mxu0 0.0
    %482 = vmatpush.msra.mxu0 0.0
    %483 = vmatpush.msra.mxu0 0.0
    %484 = vmatpush.msra.mxu0 0.0
    %485 = vmatpush.msra.mxu0 0.0
    %486 = vmatpush.msra.mxu0 0.0
    %487 = vmatpush.msra.mxu0 0.0
    %488 = vmatpush.msra.mxu0 0.0
    %489 = vmatpush.msra.mxu0 0.0
    %490 = vmatpush.msra.mxu0 0.0
    %491 = vmatpush.msra.mxu0 0.0
    %492 = vmatpush.msra.mxu0 0.0
    %493 = vmatpush.msra.mxu0 %v87
    %494 = vmatpush.msra.mxu0 %v86
    %495 = vmatpush.msra.mxu0 %v85
    %496 = vmatpush.msra.mxu0 %v84
    %497 = vmatmul.f32.gmra.mxu0 %v479
    %v498 = vpop.f32.mrf.mxu0
    %v499 = vadd.f32 0.0, %v498
    %500 = vdwg.mxu0
    %v502 = vrot.slane %v499, 6
    %v503 = vrot.slane %v499, 7
    %v506 = vadd.f32 %v245, %v502
    %v507 = vadd.f32 %v248, %v503
    %v508 = vxor.u32 %v506, 2147483648
    %v509 = vxor.u32 %v507, 2147483648
    %v510 = vmul.f32 %v508, 1.442695
    %v511 = vpow.pop %v510
    %v512 = vmul.f32 %v509, 1.442695
    %v513 = vpow.pop %v512
    %v514 = vadd.f32 %v511, 1.0
    %v515 = vadd.f32 %v513, 1.0
    %v516 = vrcp.pop %v514
    %v517 = vmul.f32 %v514, %v516
    %v518 = vsub.f32 1.0, %v517
    %v519 = vmul.f32 %v516, %v518
    %v520 = vadd.f32 %v516, %v519
    %vm521 = vweird.f32 %v514
    %vm522 = vweird.f32 %v516
    %vm523 = vmor %vm521, %vm522
    %v524 = vsel %vm523, %v516, %v520
    %v525 = vand.u32 2147483647, %v514
    %vm526 = vcmp.eq.f32.partialorder %v525, 8.507059e+37
    %v527 = vand.u32 %v514, 2147483648
    %v528 = vor.u32 1.1754944e-38, %v527
    %v529 = vsel %vm526, %v528, %v524
    %v530 = vmul.f32 1.0, %v529
    %v531 = vrcp.pop %v515
    %v532 = vmul.f32 %v515, %v531
    %v533 = vsub.f32 1.0, %v532
    %v534 = vmul.f32 %v531, %v533
    %v535 = vadd.f32 %v531, %v534
    %vm536 = vweird.f32 %v515
    %vm537 = vweird.f32 %v531
    %vm538 = vmor %vm536, %vm537
    %v539 = vsel %vm538, %v531, %v535
    %v540 = vand.u32 2147483647, %v515
    %vm541 = vcmp.eq.f32.partialorder %v540, 8.507059e+37
    %v542 = vand.u32 %v515, 2147483648
    %v543 = vor.u32 1.1754944e-38, %v542
    %v544 = vsel %vm541, %v543, %v539
    %v545 = vmul.f32 1.0, %v544
    %v546 = vtanh.pop %v506
    %v547 = vtanh.pop %v507
    %v550 = vrot.slane %v459, 7
    %v551 = vrot.slane %v460, 7
    %v554 = vmul.f32 %v530, %v550
    %v555 = vmul.f32 %v545, %v551
    %558 = vrot.lane.b32.xlu0 %v546, 64
    %v559 = vpop.permute.xlu0 %558
    %560 = vrot.lane.b32.xlu0 %v547, 64
    %v561 = vpop.permute.xlu0 %560
    %v564 = vmul.f32 %v530, %v559
    %v565 = vmul.f32 %v545, %v561
    %568 = vrot.lane.b32.xlu0 %v564, 32
    %v569 = vpop.permute.xlu0 %568
    %570 = vrot.lane.b32.xlu0 %v565, 32
    %v571 = vpop.permute.xlu0 %570
    %v574 = vadd.f32 %v554, %v569
    %v575 = vadd.f32 %v555, %v571
    %v576 = vtanh.pop %v574
    %v577 = vtanh.pop %v575
    %580 = vrot.lane.b32.xlu0 %v576, 64
    %v581 = vpop.permute.xlu0 %580
    %582 = vrot.lane.b32.xlu0 %v577, 64
    %v583 = vpop.permute.xlu0 %582
    %v586 = vmul.f32 %v530, %v581
    %v587 = vmul.f32 %v545, %v583
    %v590 = vrot.slane %v586, 2
    %v591 = vrot.slane %v587, 1
    %v592 = vsel %vm361, %v591, %v590
    %593 = vrot.lane.b32.xlu0 %v592, 32
    %v594 = vpop.permute.xlu0 %593
    %v595 = vsel %vm251, %v594, 0
    %597 = vmatpush.msra.mxu0 0.0
    %598 = vmatpush.msra.mxu0 0.0
    %599 = vmatpush.msra.mxu0 0.0
    %600 = vmatpush.msra.mxu0 0.0
    %601 = vmatpush.msra.mxu0 0.0
    %602 = vmatpush.msra.mxu0 0.0
    %603 = vmatpush.msra.mxu0 0.0
    %604 = vmatpush.msra.mxu0 0.0
    %605 = vmatpush.msra.mxu0 0.0
    %606 = vmatpush.msra.mxu0 0.0
    %607 = vmatpush.msra.mxu0 0.0
    %608 = vmatpush.msra.mxu0 0.0
    %609 = vmatpush.msra.mxu0 %v87
    %610 = vmatpush.msra.mxu0 %v86
    %611 = vmatpush.msra.mxu0 %v85
    %612 = vmatpush.msra.mxu0 %v84
    %613 = vmatmul.f32.gmra.mxu0 %v595
    %v614 = vpop.f32.mrf.mxu0
    %v615 = vadd.f32 0.0, %v614
    %616 = vdwg.mxu0
    %v618 = vrot.slane %v615, 5
    %v619 = vrot.slane %v615, 6
    %v622 = vadd.f32 %v245, %v618
    %v623 = vadd.f32 %v248, %v619
    %v624 = vxor.u32 %v622, 2147483648
    %v625 = vxor.u32 %v623, 2147483648
    %v626 = vmul.f32 %v624, 1.442695
    %v627 = vpow.pop %v626
    %v628 = vmul.f32 %v625, 1.442695
    %v629 = vpow.pop %v628
    %v630 = vadd.f32 %v627, 1.0
    %v631 = vadd.f32 %v629, 1.0
    %v632 = vrcp.pop %v630
    %v633 = vmul.f32 %v630, %v632
    %v634 = vsub.f32 1.0, %v633
    %v635 = vmul.f32 %v632, %v634
    %v636 = vadd.f32 %v632, %v635
    %vm637 = vweird.f32 %v630
    %vm638 = vweird.f32 %v632
    %vm639 = vmor %vm637, %vm638
    %v640 = vsel %vm639, %v632, %v636
    %v641 = vand.u32 2147483647, %v630
    %vm642 = vcmp.eq.f32.partialorder %v641, 8.507059e+37
    %v643 = vand.u32 %v630, 2147483648
    %v644 = vor.u32 1.1754944e-38, %v643
    %v645 = vsel %vm642, %v644, %v640
    %v646 = vmul.f32 1.0, %v645
    %v647 = vrcp.pop %v631
    %v648 = vmul.f32 %v631, %v647
    %v649 = vsub.f32 1.0, %v648
    %v650 = vmul.f32 %v647, %v649
    %v651 = vadd.f32 %v647, %v650
    %vm652 = vweird.f32 %v631
    %vm653 = vweird.f32 %v647
    %vm654 = vmor %vm652, %vm653
    %v655 = vsel %vm654, %v647, %v651
    %v656 = vand.u32 2147483647, %v631
    %vm657 = vcmp.eq.f32.partialorder %v656, 8.507059e+37
    %v658 = vand.u32 %v631, 2147483648
    %v659 = vor.u32 1.1754944e-38, %v658
    %v660 = vsel %vm657, %v659, %v655
    %v661 = vmul.f32 1.0, %v660
    %v662 = vtanh.pop %v622
    %v663 = vtanh.pop %v623
    %v666 = vrot.slane %v574, 7
    %v667 = vrot.slane %v575, 7
    %v670 = vmul.f32 %v646, %v666
    %v671 = vmul.f32 %v661, %v667
    %674 = vrot.lane.b32.xlu0 %v662, 64
    %v675 = vpop.permute.xlu0 %674
    %676 = vrot.lane.b32.xlu0 %v663, 64
    %v677 = vpop.permute.xlu0 %676
    %v680 = vmul.f32 %v646, %v675
    %v681 = vmul.f32 %v661, %v677
    %684 = vrot.lane.b32.xlu0 %v680, 32
    %v685 = vpop.permute.xlu0 %684
    %686 = vrot.lane.b32.xlu0 %v681, 32
    %v687 = vpop.permute.xlu0 %686
    %v690 = vadd.f32 %v670, %v685
    %v691 = vadd.f32 %v671, %v687
    %v692 = vtanh.pop %v690
    %v693 = vtanh.pop %v691
    %696 = vrot.lane.b32.xlu0 %v692, 64
    %v697 = vpop.permute.xlu0 %696
    %698 = vrot.lane.b32.xlu0 %v693, 64
    %v699 = vpop.permute.xlu0 %698
    %v702 = vmul.f32 %v646, %v697
    %v703 = vmul.f32 %v661, %v699
    %v706 = vrot.slane %v702, 3
    %v707 = vrot.slane %v703, 2
    %v708 = vsel %vm361, %v707, %v706
    %709 = vrot.lane.b32.xlu0 %v708, 32
    %v710 = vpop.permute.xlu0 %709
    %v711 = vsel %vm251, %v710, 0
    %713 = vmatpush.msra.mxu0 0.0
    %714 = vmatpush.msra.mxu0 0.0
    %715 = vmatpush.msra.mxu0 0.0
    %716 = vmatpush.msra.mxu0 0.0
    %717 = vmatpush.msra.mxu0 0.0
    %718 = vmatpush.msra.mxu0 0.0
    %719 = vmatpush.msra.mxu0 0.0
    %720 = vmatpush.msra.mxu0 0.0
    %721 = vmatpush.msra.mxu0 0.0
    %722 = vmatpush.msra.mxu0 0.0
    %723 = vmatpush.msra.mxu0 0.0
    %724 = vmatpush.msra.mxu0 0.0
    %725 = vmatpush.msra.mxu0 %v87
    %726 = vmatpush.msra.mxu0 %v86
    %727 = vmatpush.msra.mxu0 %v85
    %728 = vmatpush.msra.mxu0 %v84
    %729 = vmatmul.f32.gmra.mxu0 %v711
    %v730 = vpop.f32.mrf.mxu0
    %v731 = vadd.f32 0.0, %v730
    %732 = vdwg.mxu0
    %v734 = vrot.slane %v731, 4
    %v735 = vrot.slane %v731, 5
    %v738 = vadd.f32 %v245, %v734
    %v739 = vadd.f32 %v248, %v735
    %v740 = vxor.u32 %v738, 2147483648
    %v741 = vxor.u32 %v739, 2147483648
    %v742 = vmul.f32 %v740, 1.442695
    %v743 = vpow.pop %v742
    %v744 = vmul.f32 %v741, 1.442695
    %v745 = vpow.pop %v744
    %v746 = vadd.f32 %v743, 1.0
    %v747 = vadd.f32 %v745, 1.0
    %v748 = vrcp.pop %v746
    %v749 = vmul.f32 %v746, %v748
    %v750 = vsub.f32 1.0, %v749
    %v751 = vmul.f32 %v748, %v750
    %v752 = vadd.f32 %v748, %v751
    %vm753 = vweird.f32 %v746
    %vm754 = vweird.f32 %v748
    %vm755 = vmor %vm753, %vm754
    %v756 = vsel %vm755, %v748, %v752
    %v757 = vand.u32 2147483647, %v746
    %vm758 = vcmp.eq.f32.partialorder %v757, 8.507059e+37
    %v759 = vand.u32 %v746, 2147483648
    %v760 = vor.u32 1.1754944e-38, %v759
    %v761 = vsel %vm758, %v760, %v756
    %v762 = vmul.f32 1.0, %v761
    %v763 = vrcp.pop %v747
    %v764 = vmul.f32 %v747, %v763
    %v765 = vsub.f32 1.0, %v764
    %v766 = vmul.f32 %v763, %v765
    %v767 = vadd.f32 %v763, %v766
    %vm768 = vweird.f32 %v747
    %vm769 = vweird.f32 %v763
    %vm770 = vmor %vm768, %vm769
    %v771 = vsel %vm770, %v763, %v767
    %v772 = vand.u32 2147483647, %v747
    %vm773 = vcmp.eq.f32.partialorder %v772, 8.507059e+37
    %v774 = vand.u32 %v747, 2147483648
    %v775 = vor.u32 1.1754944e-38, %v774
    %v776 = vsel %vm773, %v775, %v771
    %v777 = vmul.f32 1.0, %v776
    %v778 = vtanh.pop %v738
    %v779 = vtanh.pop %v739
    %v782 = vrot.slane %v690, 7
    %v783 = vrot.slane %v691, 7
    %v786 = vmul.f32 %v762, %v782
    %v787 = vmul.f32 %v777, %v783
    %790 = vrot.lane.b32.xlu0 %v778, 64
    %v791 = vpop.permute.xlu0 %790
    %792 = vrot.lane.b32.xlu0 %v779, 64
    %v793 = vpop.permute.xlu0 %792
    %v796 = vmul.f32 %v762, %v791
    %v797 = vmul.f32 %v777, %v793
    %800 = vrot.lane.b32.xlu0 %v796, 32
    %v801 = vpop.permute.xlu0 %800
    %802 = vrot.lane.b32.xlu0 %v797, 32
    %v803 = vpop.permute.xlu0 %802
    %v806 = vadd.f32 %v786, %v801
    %v807 = vadd.f32 %v787, %v803
    %v808 = vtanh.pop %v806
    %v809 = vtanh.pop %v807
    %812 = vrot.lane.b32.xlu0 %v808, 64
    %v813 = vpop.permute.xlu0 %812
    %814 = vrot.lane.b32.xlu0 %v809, 64
    %v815 = vpop.permute.xlu0 %814
    %v818 = vmul.f32 %v762, %v813
    %v819 = vmul.f32 %v777, %v815
    %v822 = vrot.slane %v818, 4
    %v823 = vrot.slane %v819, 3
    %v824 = vsel %vm361, %v823, %v822
    %825 = vrot.lane.b32.xlu0 %v824, 32
    %v826 = vpop.permute.xlu0 %825
    %v827 = vsel %vm251, %v826, 0
    %829 = vmatpush.msra.mxu0 0.0
    %830 = vmatpush.msra.mxu0 0.0
    %831 = vmatpush.msra.mxu0 0.0
    %832 = vmatpush.msra.mxu0 0.0
    %833 = vmatpush.msra.mxu0 0.0
    %834 = vmatpush.msra.mxu0 0.0
    %835 = vmatpush.msra.mxu0 0.0
    %836 = vmatpush.msra.mxu0 0.0
    %837 = vmatpush.msra.mxu0 0.0
    %838 = vmatpush.msra.mxu0 0.0
    %839 = vmatpush.msra.mxu0 0.0
    %840 = vmatpush.msra.mxu0 0.0
    %841 = vmatpush.msra.mxu0 %v87
    %842 = vmatpush.msra.mxu0 %v86
    %843 = vmatpush.msra.mxu0 %v85
    %844 = vmatpush.msra.mxu0 %v84
    %845 = vmatmul.f32.gmra.mxu0 %v827
    %v846 = vpop.f32.mrf.mxu0
    %v847 = vadd.f32 0.0, %v846
    %848 = vdwg.mxu0
    %v850 = vrot.slane %v847, 3
    %v851 = vrot.slane %v847, 4
    %v854 = vadd.f32 %v245, %v850
    %v855 = vadd.f32 %v248, %v851
    %v856 = vxor.u32 %v854, 2147483648
    %v857 = vxor.u32 %v855, 2147483648
    %v858 = vmul.f32 %v856, 1.442695
    %v859 = vpow.pop %v858
    %v860 = vmul.f32 %v857, 1.442695
    %v861 = vpow.pop %v860
    %v862 = vadd.f32 %v859, 1.0
    %v863 = vadd.f32 %v861, 1.0
    %v864 = vrcp.pop %v862
    %v865 = vmul.f32 %v862, %v864
    %v866 = vsub.f32 1.0, %v865
    %v867 = vmul.f32 %v864, %v866
    %v868 = vadd.f32 %v864, %v867
    %vm869 = vweird.f32 %v862
    %vm870 = vweird.f32 %v864
    %vm871 = vmor %vm869, %vm870
    %v872 = vsel %vm871, %v864, %v868
    %v873 = vand.u32 2147483647, %v862
    %vm874 = vcmp.eq.f32.partialorder %v873, 8.507059e+37
    %v875 = vand.u32 %v862, 2147483648
    %v876 = vor.u32 1.1754944e-38, %v875
    %v877 = vsel %vm874, %v876, %v872
    %v878 = vmul.f32 1.0, %v877
    %v879 = vrcp.pop %v863
    %v880 = vmul.f32 %v863, %v879
    %v881 = vsub.f32 1.0, %v880
    %v882 = vmul.f32 %v879, %v881
    %v883 = vadd.f32 %v879, %v882
    %vm884 = vweird.f32 %v863
    %vm885 = vweird.f32 %v879
    %vm886 = vmor %vm884, %vm885
    %v887 = vsel %vm886, %v879, %v883
    %v888 = vand.u32 2147483647, %v863
    %vm889 = vcmp.eq.f32.partialorder %v888, 8.507059e+37
    %v890 = vand.u32 %v863, 2147483648
    %v891 = vor.u32 1.1754944e-38, %v890
    %v892 = vsel %vm889, %v891, %v887
    %v893 = vmul.f32 1.0, %v892
    %v894 = vtanh.pop %v854
    %v895 = vtanh.pop %v855
    %v898 = vrot.slane %v806, 7
    %v899 = vrot.slane %v807, 7
    %v902 = vmul.f32 %v878, %v898
    %v903 = vmul.f32 %v893, %v899
    %906 = vrot.lane.b32.xlu0 %v894, 64
    %v907 = vpop.permute.xlu0 %906
    %908 = vrot.lane.b32.xlu0 %v895, 64
    %v909 = vpop.permute.xlu0 %908
    %v912 = vmul.f32 %v878, %v907
    %v913 = vmul.f32 %v893, %v909
    %916 = vrot.lane.b32.xlu0 %v912, 32
    %v917 = vpop.permute.xlu0 %916
    %918 = vrot.lane.b32.xlu0 %v913, 32
    %v919 = vpop.permute.xlu0 %918
    %v922 = vadd.f32 %v902, %v917
    %v923 = vadd.f32 %v903, %v919
    %v924 = vtanh.pop %v922
    %v925 = vtanh.pop %v923
    %928 = vrot.lane.b32.xlu0 %v924, 64
    %v929 = vpop.permute.xlu0 %928
    %930 = vrot.lane.b32.xlu0 %v925, 64
    %v931 = vpop.permute.xlu0 %930
    %v934 = vmul.f32 %v878, %v929
    %v935 = vmul.f32 %v893, %v931
    %v938 = vrot.slane %v934, 5
    %v939 = vrot.slane %v935, 4
    %v940 = vsel %vm361, %v939, %v938
    %941 = vrot.lane.b32.xlu0 %v940, 32
    %v942 = vpop.permute.xlu0 %941
    %v943 = vsel %vm251, %v942, 0
    %945 = vmatpush.msra.mxu0 0.0
    %946 = vmatpush.msra.mxu0 0.0
    %947 = vmatpush.msra.mxu0 0.0
    %948 = vmatpush.msra.mxu0 0.0
    %949 = vmatpush.msra.mxu0 0.0
    %950 = vmatpush.msra.mxu0 0.0
    %951 = vmatpush.msra.mxu0 0.0
    %952 = vmatpush.msra.mxu0 0.0
    %953 = vmatpush.msra.mxu0 0.0
    %954 = vmatpush.msra.mxu0 0.0
    %955 = vmatpush.msra.mxu0 0.0
    %956 = vmatpush.msra.mxu0 0.0
    %957 = vmatpush.msra.mxu0 %v87
    %958 = vmatpush.msra.mxu0 %v86
    %959 = vmatpush.msra.mxu0 %v85
    %960 = vmatpush.msra.mxu0 %v84
    %961 = vmatmul.f32.gmra.mxu0 %v943
    %v962 = vpop.f32.mrf.mxu0
    %v963 = vadd.f32 0.0, %v962
    %964 = vdwg.mxu0
    %v966 = vrot.slane %v963, 2
    %v967 = vrot.slane %v963, 3
    %v970 = vadd.f32 %v245, %v966
    %v971 = vadd.f32 %v248, %v967
    %v972 = vxor.u32 %v970, 2147483648
    %v973 = vxor.u32 %v971, 2147483648
    %v974 = vmul.f32 %v972, 1.442695
    %v975 = vpow.pop %v974
    %v976 = vmul.f32 %v973, 1.442695
    %v977 = vpow.pop %v976
    %v978 = vadd.f32 %v975, 1.0
    %v979 = vadd.f32 %v977, 1.0
    %v980 = vrcp.pop %v978
    %v981 = vmul.f32 %v978, %v980
    %v982 = vsub.f32 1.0, %v981
    %v983 = vmul.f32 %v980, %v982
    %v984 = vadd.f32 %v980, %v983
    %vm985 = vweird.f32 %v978
    %vm986 = vweird.f32 %v980
    %vm987 = vmor %vm985, %vm986
    %v988 = vsel %vm987, %v980, %v984
    %v989 = vand.u32 2147483647, %v978
    %vm990 = vcmp.eq.f32.partialorder %v989, 8.507059e+37
    %v991 = vand.u32 %v978, 2147483648
    %v992 = vor.u32 1.1754944e-38, %v991
    %v993 = vsel %vm990, %v992, %v988
    %v994 = vmul.f32 1.0, %v993
    %v995 = vrcp.pop %v979
    %v996 = vmul.f32 %v979, %v995
    %v997 = vsub.f32 1.0, %v996
    %v998 = vmul.f32 %v995, %v997
    %v999 = vadd.f32 %v995, %v998
    %vm1000 = vweird.f32 %v979
    %vm1001 = vweird.f32 %v995
    %vm1002 = vmor %vm1000, %vm1001
    %v1003 = vsel %vm1002, %v995, %v999
    %v1004 = vand.u32 2147483647, %v979
    %vm1005 = vcmp.eq.f32.partialorder %v1004, 8.507059e+37
    %v1006 = vand.u32 %v979, 2147483648
    %v1007 = vor.u32 1.1754944e-38, %v1006
    %v1008 = vsel %vm1005, %v1007, %v1003
    %v1009 = vmul.f32 1.0, %v1008
    %v1010 = vtanh.pop %v970
    %v1011 = vtanh.pop %v971
    %v1014 = vrot.slane %v922, 7
    %v1015 = vrot.slane %v923, 7
    %v1018 = vmul.f32 %v994, %v1014
    %v1019 = vmul.f32 %v1009, %v1015
    %1022 = vrot.lane.b32.xlu0 %v1010, 64
    %v1023 = vpop.permute.xlu0 %1022
    %1024 = vrot.lane.b32.xlu0 %v1011, 64
    %v1025 = vpop.permute.xlu0 %1024
    %v1028 = vmul.f32 %v994, %v1023
    %v1029 = vmul.f32 %v1009, %v1025
    %1032 = vrot.lane.b32.xlu0 %v1028, 32
    %v1033 = vpop.permute.xlu0 %1032
    %1034 = vrot.lane.b32.xlu0 %v1029, 32
    %v1035 = vpop.permute.xlu0 %1034
    %v1038 = vadd.f32 %v1018, %v1033
    %v1039 = vadd.f32 %v1019, %v1035
    %v1040 = vtanh.pop %v1038
    %v1041 = vtanh.pop %v1039
    %1044 = vrot.lane.b32.xlu0 %v1040, 64
    %v1045 = vpop.permute.xlu0 %1044
    %1046 = vrot.lane.b32.xlu0 %v1041, 64
    %v1047 = vpop.permute.xlu0 %1046
    %v1050 = vmul.f32 %v994, %v1045
    %v1051 = vmul.f32 %v1009, %v1047
    %v1054 = vrot.slane %v1050, 6
    %v1055 = vrot.slane %v1051, 5
    %v1056 = vsel %vm361, %v1055, %v1054
    %1057 = vrot.lane.b32.xlu0 %v1056, 32
    %v1058 = vpop.permute.xlu0 %1057
    %v1059 = vsel %vm251, %v1058, 0
    %1061 = vmatpush.msra.mxu0 0.0
    %1062 = vmatpush.msra.mxu0 0.0
    %1063 = vmatpush.msra.mxu0 0.0
    %1064 = vmatpush.msra.mxu0 0.0
    %1065 = vmatpush.msra.mxu0 0.0
    %1066 = vmatpush.msra.mxu0 0.0
    %1067 = vmatpush.msra.mxu0 0.0
    %1068 = vmatpush.msra.mxu0 0.0
    %1069 = vmatpush.msra.mxu0 0.0
    %1070 = vmatpush.msra.mxu0 0.0
    %1071 = vmatpush.msra.mxu0 0.0
    %1072 = vmatpush.msra.mxu0 0.0
    %1073 = vmatpush.msra.mxu0 %v87
    %1074 = vmatpush.msra.mxu0 %v86
    %1075 = vmatpush.msra.mxu0 %v85
    %1076 = vmatpush.msra.mxu0 %v84
    %1077 = vmatmul.f32.gmra.mxu0 %v1059
    %v1078 = vpop.f32.mrf.mxu0
    %v1079 = vadd.f32 0.0, %v1078
    %1080 = vdwg.mxu0
    %v1082 = vrot.slane %v1079, 1
    %v1083 = vrot.slane %v1079, 2
    %v1086 = vadd.f32 %v245, %v1082
    %v1087 = vadd.f32 %v248, %v1083
    %v1088 = vxor.u32 %v1086, 2147483648
    %v1089 = vxor.u32 %v1087, 2147483648
    %v1090 = vmul.f32 %v1088, 1.442695
    %v1091 = vpow.pop %v1090
    %v1092 = vmul.f32 %v1089, 1.442695
    %v1093 = vpow.pop %v1092
    %v1094 = vadd.f32 %v1091, 1.0
    %v1095 = vadd.f32 %v1093, 1.0
    %v1096 = vrcp.pop %v1094
    %v1097 = vmul.f32 %v1094, %v1096
    %v1098 = vsub.f32 1.0, %v1097
    %v1099 = vmul.f32 %v1096, %v1098
    %v1100 = vadd.f32 %v1096, %v1099
    %vm1101 = vweird.f32 %v1094
    %vm1102 = vweird.f32 %v1096
    %vm1103 = vmor %vm1101, %vm1102
    %v1104 = vsel %vm1103, %v1096, %v1100
    %v1105 = vand.u32 2147483647, %v1094
    %vm1106 = vcmp.eq.f32.partialorder %v1105, 8.507059e+37
    %v1107 = vand.u32 %v1094, 2147483648
    %v1108 = vor.u32 1.1754944e-38, %v1107
    %v1109 = vsel %vm1106, %v1108, %v1104
    %v1110 = vmul.f32 1.0, %v1109
    %v1111 = vrcp.pop %v1095
    %v1112 = vmul.f32 %v1095, %v1111
    %v1113 = vsub.f32 1.0, %v1112
    %v1114 = vmul.f32 %v1111, %v1113
    %v1115 = vadd.f32 %v1111, %v1114
    %vm1116 = vweird.f32 %v1095
    %vm1117 = vweird.f32 %v1111
    %vm1118 = vmor %vm1116, %vm1117
    %v1119 = vsel %vm1118, %v1111, %v1115
    %v1120 = vand.u32 2147483647, %v1095
    %vm1121 = vcmp.eq.f32.partialorder %v1120, 8.507059e+37
    %v1122 = vand.u32 %v1095, 2147483648
    %v1123 = vor.u32 1.1754944e-38, %v1122
    %v1124 = vsel %vm1121, %v1123, %v1119
    %v1125 = vmul.f32 1.0, %v1124
    %v1126 = vtanh.pop %v1086
    %v1127 = vtanh.pop %v1087
    %v1130 = vrot.slane %v1038, 7
    %v1131 = vrot.slane %v1039, 7
    %v1134 = vmul.f32 %v1110, %v1130
    %v1135 = vmul.f32 %v1125, %v1131
    %1138 = vrot.lane.b32.xlu0 %v1126, 64
    %v1139 = vpop.permute.xlu0 %1138
    %1140 = vrot.lane.b32.xlu0 %v1127, 64
    %v1141 = vpop.permute.xlu0 %1140
    %v1144 = vmul.f32 %v1110, %v1139
    %v1145 = vmul.f32 %v1125, %v1141
    %1148 = vrot.lane.b32.xlu0 %v1144, 32
    %v1149 = vpop.permute.xlu0 %1148
    %1150 = vrot.lane.b32.xlu0 %v1145, 32
    %v1151 = vpop.permute.xlu0 %1150
    %v1154 = vadd.f32 %v1134, %v1149
    %v1155 = vadd.f32 %v1135, %v1151
    %v1156 = vtanh.pop %v1154
    %v1157 = vtanh.pop %v1155
    %1160 = vrot.lane.b32.xlu0 %v1156, 64
    %v1161 = vpop.permute.xlu0 %1160
    %1162 = vrot.lane.b32.xlu0 %v1157, 64
    %v1163 = vpop.permute.xlu0 %1162
    %v1166 = vmul.f32 %v1110, %v1161
    %v1167 = vmul.f32 %v1125, %v1163
    %v1168 = vperm.slane %v96, 0
    %v1171 = vrot.slane %v1166, 7
    %v1172 = vrot.slane %v1167, 6
    %v1173 = vsel %vm361, %v1172, %v1171
    %1174 = vrot.lane.b32.xlu0 %v1173, 32
    %v1175 = vpop.permute.xlu0 %1174
    %v1176 = vsel %vm251, %v1175, 0
    %1178 = vmatpush.msra.mxu0 0.0
    %1179 = vmatpush.msra.mxu0 0.0
    %1180 = vmatpush.msra.mxu0 0.0
    %1181 = vmatpush.msra.mxu0 0.0
    %1182 = vmatpush.msra.mxu0 0.0
    %1183 = vmatpush.msra.mxu0 0.0
    %1184 = vmatpush.msra.mxu0 0.0
    %1185 = vmatpush.msra.mxu0 0.0
    %1186 = vmatpush.msra.mxu0 0.0
    %1187 = vmatpush.msra.mxu0 0.0
    %1188 = vmatpush.msra.mxu0 0.0
    %1189 = vmatpush.msra.mxu0 0.0
    %1190 = vmatpush.msra.mxu0 %v91
    %1191 = vmatpush.msra.mxu0 %v90
    %1192 = vmatpush.msra.mxu0 %v89
    %1193 = vmatpush.msra.mxu0 %v88
    %1194 = vmatmul.f32.gmra.mxu0 %v1176
    %v1195 = vpop.f32.mrf.mxu0
    %v1196 = vadd.f32 %v1168, %v1195
    %1197 = vdwg.mxu0
    %v1198 = vrot.slane %v1167, 7
    %1199 = vrot.lane.b32.xlu0 %v1166, 32
    %v1200 = vpop.permute.xlu0 %1199
    %1201 = vrot.lane.b32.xlu0 %v1198, 32
    %v1202 = vpop.permute.xlu0 %1201
    %v1207 = vrot.slane %v1155, 7
    %v1211 = vrot.slane %v1196, 1
    %v1213 = vsel %vm251, %v1200, %v1154
    %v1214 = vsel %vm251, %v1202, %v1207
    %vm1215 = vcmask 523264
    %v1216 = vsel %vm1215, %v1213, %v1211
    %v1217 = vsel %vm1215, %v1214, %v1211
    %1218 = vst [vmem:[%s4 - $0x7] sm:$0x80] %v1216
    %1219 = vst [vmem:[%s4 + $0x1] sm:$0x1] %v1217
    // Predicated region
    $region22: #{qnet_forward.1} parent=1 // pred_check
      _
    $region23: #{qnet_forward.1} parent=1 // pred_check_branch
      %1221 = sbr.rel (0) target = $region25
    $region24: #{qnet_forward.1} parent=1 // pred_region
      _
    $region25: #{qnet_forward.1} parent=1 // pred_fallthru
      _
    // Predicated region
    $region26: #{qnet_forward.1} parent=1 // pred_check
      _
    $region27: #{qnet_forward.1} parent=1 // pred_check_branch
      %1223 = sbr.rel (0) target = $region29
    $region28: #{qnet_forward.1} parent=1 // pred_region
      _
    $region29: #{qnet_forward.1} parent=1 // pred_fallthru
      _
    %1224 = vsyncpa [#allocation3], 1

</llo_original>
